<compile_context>
chip_gen: v5e
topology: v5e:2x2
jax: 0.10.0
libtpu: 0.0.40
codegen_flags: <defaults>
</compile_context>

<pallas_src>
import functools

import jax
import jax.numpy as jnp
from jax.experimental import pallas as pl
from jax.experimental.pallas import tpu as pltpu


def _conv_bn_relu_kernel(x_ref, w_ref, b_ref, o_ref):
    # x_ref: (Nb*H, Kpad)    bf16  im2row activation rows (Nb images x H rows)
    # w_ref: (Kpad, W*Cout)  bf16  banded 3x3 weights, BN scale folded, K-padded
    # b_ref: (1,    W*Cout)  f32   folded BN bias, tiled along W
    # o_ref: (Nb*H, W*Cout)  bf16  lane-dense output rows
    acc = jnp.dot(x_ref[...], w_ref[...], preferred_element_type=jnp.float32)
    # Fused BatchNorm bias + ReLU epilogue in f32 (Dropout = identity, eval).
    o_ref[...] = jnp.maximum(acc + b_ref[...], 0.0).astype(o_ref.dtype)


def fold_conv_block_params(conv_w, bn_gamma, bn_beta, bn_mean, bn_var, W,
                           eps=1e-5):
    """One-time (per-model, not per-call) weight transform.

    conv_w : (Cout, Cin, 3, 3) f32, PyTorch OIHW layout.
    Returns (wslab, bias_row):
      wslab    : (Kpad, W*Cout) bf16 block-banded weights with BN scale folded,
                 Kpad = 3*(W+2)*Cin rounded up to a multiple of 128.
      bias_row : (1, W*Cout)    f32 folded BN bias tiled along W.
    """
    Cout, Cin, _, _ = conv_w.shape
    wc_in = (W + 2) * Cin
    wc_out = W * Cout
    k_raw = 3 * wc_in
    kpad = ((k_raw + 127) // 128) * 128

    scale = bn_gamma / jnp.sqrt(bn_var + eps)                    # (Cout,)
    bias = bn_beta - bn_mean * scale                             # (Cout,)
    # Fold BN scale into the conv weights; reorder to [dy, dx, Cin, Cout].
    w_taps = jnp.transpose(conv_w * scale[:, None, None, None],
                           (2, 3, 1, 0))                         # (3,3,Cin,Cout)
    # Block-banded slab per kernel row dy:
    #   wband[dy][(w+dx)*Cin + c, w*Cout + co] = w_taps[dy, dx, c, co]
    wband = [
        sum(jnp.kron(jnp.eye(W + 2, W, k=-dx, dtype=jnp.float32),
                     w_taps[dy, dx])
            for dx in range(3))
        for dy in range(3)
    ]
    # Fold the dy taps into one wide K axis, zero-pad K to a lane multiple.
    wslab = jnp.concatenate(wband, axis=0)                       # (3*wc_in, wc_out)
    wslab = jnp.pad(wslab, ((0, kpad - k_raw), (0, 0))).astype(jnp.bfloat16)
    bias_row = jnp.tile(bias, W).reshape(1, wc_out).astype(jnp.float32)
    return wslab, bias_row


@functools.partial(jax.jit, static_argnames=("block_images",))
def conv_block_forward(x_nchw, wslab, bias_row, *, block_images=4):
    """Eval-mode forward of FractalNet's ConvBlock.

    x_nchw : (N, Cin, H, W) f32
    returns: (N, Cout, H, W) bf16  (f32 accumulate/epilogue, bf16 store)
    """
    N, Cin, H, W = x_nchw.shape
    kpad, wc_out = wslab.shape
    Cout = wc_out // W
    wc_in = (W + 2) * Cin
    k_raw = 3 * wc_in

    # Images per grid step (amortizes the ~600-cycle per-step overhead and
    # grows the matmul M to Nb*H rows).  Fall back to a divisor of N.
    nb = max(1, block_images)
    while N % nb:
        nb //= 2
    m_blk = nb * H

    # --- activation layout: NCHW -> padded NHWC -> per-output-row im2row ----
    # (In a multi-block network this stays in the rows format between blocks;
    #  the NCHW round-trip is only for the single-block demo API.)
    x_nhwc = jnp.transpose(x_nchw, (0, 2, 3, 1))                 # (N,H,W,Cin)
    x_pad = jnp.pad(x_nhwc, ((0, 0), (1, 1), (1, 1), (0, 0)))    # (N,H+2,W+2,Cin)
    x_rows = x_pad.reshape(N, H + 2, wc_in)                      # (N,H+2,(W+2)Cin)
    # im2row over the 3 kernel rows: last axis becomes 3*(W+2)*Cin.
    x_im2 = jnp.concatenate(
        [x_rows[:, 0:H], x_rows[:, 1:H + 1], x_rows[:, 2:H + 2]], axis=-1)
    x_im2 = jnp.pad(x_im2, ((0, 0), (0, 0), (0, kpad - k_raw)))  # K -> Kpad
    x2d = x_im2.reshape(N * H, kpad).astype(jnp.bfloat16)        # (N*H, Kpad)

    # --- hot path: fused conv + BN + ReLU Pallas kernel ----------------------
    out_rows = pl.pallas_call(
        _conv_bn_relu_kernel,
        out_shape=jax.ShapeDtypeStruct((N * H, wc_out), jnp.bfloat16),
        grid=(N // nb,),
        in_specs=[
            pl.BlockSpec((m_blk, kpad), lambda i: (i, 0)),
            pl.BlockSpec((kpad, wc_out), lambda i: (0, 0)),
            pl.BlockSpec((1, wc_out), lambda i: (0, 0)),
        ],
        out_specs=pl.BlockSpec((m_blk, wc_out), lambda i: (i, 0)),
        compiler_params=pltpu.CompilerParams(
            dimension_semantics=("parallel",)),
    )(x2d, wslab, bias_row)

    # Dropout: identity in eval mode.  Undo the lane-dense packing (demo only).
    out_nhwc = out_rows.reshape(N, H, W, Cout)
    return jnp.transpose(out_nhwc, (0, 3, 1, 2))                 # (N,Cout,H,W)


def conv_block_reference(x_nchw, conv_w, bn_gamma, bn_beta, bn_mean, bn_var,
                         eps=1e-5):
    """Pure-JAX (XLA conv) reference.  Operands rounded to bf16 to match the
    kernel's MXU input dtype; accumulation and epilogue in f32."""
    scale = bn_gamma / jnp.sqrt(bn_var + eps)
    bias = bn_beta - bn_mean * scale
    w_q = (conv_w * scale[:, None, None, None]).astype(jnp.bfloat16).astype(jnp.float32)
    x_q = x_nchw.astype(jnp.bfloat16).astype(jnp.float32)
    y = jax.lax.conv_general_dilated(
        x_q, w_q, window_strides=(1, 1), padding=((1, 1), (1, 1)),
        dimension_numbers=("NCHW", "OIHW", "NCHW"))
    return jnp.maximum(y + bias.reshape(1, -1, 1, 1), 0.0)


if __name__ == "__main__":
    key = jax.random.PRNGKey(0)
    k_x, k_w, k_g, k_b, k_m, k_v = jax.random.split(key, 6)

    # W * Cout = 128 -> one dense lane group; Kpad = 256 (3*(18)*4 = 216 padded).
    N, Cin, H, W = 16, 4, 16, 16
    Cout = 8
    dropout_rate = 0.3  # identity at inference

    x = jax.random.normal(k_x, (N, Cin, H, W), dtype=jnp.float32)
    conv_w = jax.random.normal(k_w, (Cout, Cin, 3, 3), dtype=jnp.float32) * 0.1
    bn_gamma = 1.0 + 0.1 * jax.random.normal(k_g, (Cout,), dtype=jnp.float32)
    bn_beta = 0.1 * jax.random.normal(k_b, (Cout,), dtype=jnp.float32)
    bn_mean = 0.1 * jax.random.normal(k_m, (Cout,), dtype=jnp.float32)
    bn_var = jnp.abs(1.0 + 0.1 * jax.random.normal(k_v, (Cout,),
                                                   dtype=jnp.float32))

    # One-time weight transform (hoisted out of the per-call path).
    wslab, bias_row = fold_conv_block_params(conv_w, bn_gamma, bn_beta,
                                             bn_mean, bn_var, W)
    wslab = jax.block_until_ready(wslab)

    out = conv_block_forward(x, wslab, bias_row, block_images=4)
    out = jax.block_until_ready(out)

    ref = conv_block_reference(x, conv_w, bn_gamma, bn_beta, bn_mean, bn_var)
    ref = jax.block_until_ready(ref)

    assert out.shape == (N, Cout, H, W), out.shape
    out_f32 = out.astype(jnp.float32)
    max_err = float(jnp.max(jnp.abs(out_f32 - ref)))
    # Output is stored in bf16 (per perf review) -> allow bf16-rounding slack.
    assert jnp.allclose(out_f32, ref, atol=1e-2, rtol=1e-2), max_err

    print("KERNEL_OK")
</pallas_src>

<mosaic_0001>
module attributes {stable_mosaic.version = 11 : i64} {
  func.func @_conv_bn_relu_kernel(%arg0: i32, %arg1: memref<64x256xbf16, #tpu.memory_space<vmem>>, %arg2: memref<256x128xbf16, #tpu.memory_space<vmem>>, %arg3: memref<1x128xf32, #tpu.memory_space<vmem>>, %arg4: memref<64x128xbf16, #tpu.memory_space<vmem>>) attributes {dimension_semantics = [#tpu.dimension_semantics<parallel>], iteration_bounds = array<i64: 4>, scalar_prefetch = 0 : i64, scratch_operands = 0 : i64, tpu.core_type = #tpu.core_type<tc>, window_params = [{transform_indices = @transform_0, window_bounds = array<i64: 64, 256>}, {pipeline_mode = #tpu.pipeline_mode<synchronous>, transform_indices = @transform_1, window_bounds = array<i64: 256, 128>}, {pipeline_mode = #tpu.pipeline_mode<synchronous>, transform_indices = @transform_2, window_bounds = array<i64: 1, 128>}, {transform_indices = @transform_3, window_bounds = array<i64: 64, 128>}]} {
    %c0 = arith.constant 0 : index
    %c0_0 = arith.constant 0 : index
    %0 = vector.load %arg1[%c0, %c0_0] : memref<64x256xbf16, #tpu.memory_space<vmem>>, vector<64x256xbf16>
    %c0_1 = arith.constant 0 : index
    %c0_2 = arith.constant 0 : index
    %1 = vector.load %arg2[%c0_1, %c0_2] : memref<256x128xbf16, #tpu.memory_space<vmem>>, vector<256x128xbf16>
    %cst = arith.constant dense<0.000000e+00> : vector<64x128xf32>
    %2 = tpu.matmul %0, %1, %cst {dimension_numbers = #tpu.dot_dimension_numbers<[1], [0], [0], [1], [0, 0, 1, 1], [], []>} : vector<64x256xbf16>, vector<256x128xbf16>, vector<64x128xf32> -> vector<64x128xf32>
    %c0_3 = arith.constant 0 : index
    %c0_4 = arith.constant 0 : index
    %3 = vector.load %arg3[%c0_3, %c0_4] : memref<1x128xf32, #tpu.memory_space<vmem>>, vector<1x128xf32>
    %4 = vector.broadcast %3 : vector<1x128xf32> to vector<64x128xf32>
    %5 = arith.addf %2, %4 : vector<64x128xf32>
    %cst_5 = arith.constant 0.000000e+00 : f32
    %6 = vector.broadcast %cst_5 : f32 to vector<64x128xf32>
    %7 = arith.maximumf %5, %6 : vector<64x128xf32>
    %8 = arith.truncf %7 : vector<64x128xf32> to vector<64x128xbf16>
    %c0_6 = arith.constant 0 : index
    %c0_7 = arith.constant 0 : index
    %9 = vector.load %arg4[%c0_6, %c0_7] : memref<64x128xbf16, #tpu.memory_space<vmem>>, vector<64x128xbf16>
    tpu.vector_store %arg4[%c0_6, %c0_7], %8 {strides = array<i32>} : memref<64x128xbf16, #tpu.memory_space<vmem>>, vector<64x128xbf16>,
    return
  }
  func.func @transform_0(%arg0: i32) -> (i32, i32) {
    %c0_i32 = arith.constant 0 : i32
    %c0_i32_0 = arith.constant 0 : i32
    return %arg0, %c0_i32 : i32, i32
  }
  func.func @transform_1(%arg0: i32) -> (i32, i32) {
    %c0_i32 = arith.constant 0 : i32
    %c0_i32_0 = arith.constant 0 : i32
    %c0_i32_1 = arith.constant 0 : i32
    return %c0_i32, %c0_i32_0 : i32, i32
  }
  func.func @transform_2(%arg0: i32) -> (i32, i32) {
    %c0_i32 = arith.constant 0 : i32
    %c0_i32_0 = arith.constant 0 : i32
    %c0_i32_1 = arith.constant 0 : i32
    return %c0_i32, %c0_i32_0 : i32, i32
  }
  func.func @transform_3(%arg0: i32) -> (i32, i32) {
    %c0_i32 = arith.constant 0 : i32
    %c0_i32_0 = arith.constant 0 : i32
    return %arg0, %c0_i32 : i32, i32
  }
}

</mosaic_0001>

<llo_original>
// kernel: conv_block_forward.1
$region0: #{conv_block_forward.1}
  #allocation0 [shape = 'u32[]', space=smem, size = 0x4, offset = 0x4, fixed_abs, tag = 'smem constant byte address 0x4 - core index']
  #allocation1 [shape = 'u32[72,128]{1,0:T(1,128)}', space=vmem, size = 0x9000, scoped, tag = 'internal scratch']
  %s0 = inlined_call_operand.vmem [shape: bf16[256,256], index: 0, kind: input, shape index: {}]
  %s1 = inlined_call_operand.vmem [shape: bf16[256,128], index: 1, kind: input, shape index: {}]
  %s2 = inlined_call_operand.vmem [shape: f32[1,128], index: 2, kind: input, shape index: {}]
  %s3 = inlined_call_operand.vmem [shape: bf16[256,128], index: 3, kind: output, shape index: {}]
  %s4 = sld [smem:[#allocation0]]
  $region45: #{conv_block_forward.1} parent=0
    _
  %s6 = ssub.s32 1, %s4
  %s7 = scalar_select 0, %s6, %s4
  loop: start=0, step=1, limit=6
  $region2: #{conv_block_forward.1} parent=0 // loop_pre_header
    _
  $region3: #{conv_block_forward.1} parent=0 // loop_header
    %s9 = sphi 0, %s13
    %p10 = scmp.ge.s32.totalorder %s9, 6
    %s19 = sphi 0, %s21
    %s22 = sphi 0, %s19
    %s23 = sphi 0, %s22
    %s39 = sphi 0, %s23
    %s43 = sphi 0, %s43
    %s45 = sphi 0, %s43
    %s46 = sphi 0, %s45
    %s60 = sphi 0, %s46
    %s64 = sphi 0, %s64
    %s66 = sphi 0, %s64
    %s67 = sphi 0, %s66
    %s81 = sphi 0, %s67
    %s87 = sphi 0, %s89
    %s90 = sphi 0, %s87
    %s91 = sphi 0, %s90
    %s107 = sphi 0, %s91
  $region4: #{conv_block_forward.1} parent=0 // loop_header_branch
    %12 = sbr.rel (%p10) target = $region8
  $region5: #{conv_block_forward.1} parent=0 // loop_body
    %s14 = ssub.s32 %s9, 1
    %s15 = ssub.s32 %s9, 2
    %s16 = sadd.s32 %s9, 1
    %s17 = ssub.s32 %s9, %s16
    %p18 = scmp.eq.s32.totalorder %s17, 0
    %s20 = sadd.s32 %s19, 1
    %s21 = scalar_select %p18, %s19, %s20
    %p24 = pneg %p18
    %p25 = scmp.eq.s32.totalorder %s9, 3
    %p26 = por %p24, %p25
    %p27 = scmp.ne.s32.totalorder %s19, %s22
    %p28 = scmp.eq.s32.totalorder %s9, 0
    %p29 = por %p27, %p28
    %p30 = scmp.ne.s32.totalorder %s19, %s22
    %p31 = scmp.eq.s32.totalorder %s14, 3
    %p32 = por %p30, %p31
    %p33 = scmp.ne.s32.totalorder %s22, %s23
    %p34 = scmp.eq.s32.totalorder %s14, 0
    %p35 = por %p33, %p34
    %p36 = scmp.ne.s32.totalorder %s22, %s23
    %p37 = scmp.eq.s32.totalorder %s15, 3
    %p38 = por %p36, %p37
    %p40 = scmp.ne.s32.totalorder %s23, %s39
    %p41 = scmp.eq.s32.totalorder %s15, 0
    %p42 = por %p40, %p41
    %s44 = sadd.s32 %s43, 1
    %p47 = scmp.eq.s32.totalorder %s9, 3
    %p48 = scmp.ne.s32.totalorder %s43, %s45
    %p49 = scmp.eq.s32.totalorder %s9, 0
    %p50 = por %p48, %p49
    %p51 = scmp.ne.s32.totalorder %s43, %s45
    %p52 = scmp.eq.s32.totalorder %s14, 3
    %p53 = por %p51, %p52
    %p54 = scmp.ne.s32.totalorder %s45, %s46
    %p55 = scmp.eq.s32.totalorder %s14, 0
    %p56 = por %p54, %p55
    %p57 = scmp.ne.s32.totalorder %s45, %s46
    %p58 = scmp.eq.s32.totalorder %s15, 3
    %p59 = por %p57, %p58
    %p61 = scmp.ne.s32.totalorder %s46, %s60
    %p62 = scmp.eq.s32.totalorder %s15, 0
    %p63 = por %p61, %p62
    %s65 = sadd.s32 %s64, 1
    %p68 = scmp.eq.s32.totalorder %s9, 3
    %p69 = scmp.ne.s32.totalorder %s64, %s66
    %p70 = scmp.eq.s32.totalorder %s9, 0
    %p71 = por %p69, %p70
    %p72 = scmp.ne.s32.totalorder %s64, %s66
    %p73 = scmp.eq.s32.totalorder %s14, 3
    %p74 = por %p72, %p73
    %p75 = scmp.ne.s32.totalorder %s66, %s67
    %p76 = scmp.eq.s32.totalorder %s14, 0
    %p77 = por %p75, %p76
    %p78 = scmp.ne.s32.totalorder %s66, %s67
    %p79 = scmp.eq.s32.totalorder %s15, 3
    %p80 = por %p78, %p79
    %p82 = scmp.ne.s32.totalorder %s67, %s81
    %p83 = scmp.eq.s32.totalorder %s15, 0
    %p84 = por %p82, %p83
    %s85 = ssub.s32 %s9, %s16
    %p86 = scmp.eq.s32.totalorder %s85, 0
    %s88 = sadd.s32 %s87, 1
    %s89 = scalar_select %p86, %s87, %s88
    %p92 = pneg %p86
    %p93 = scmp.eq.s32.totalorder %s9, 3
    %p94 = por %p92, %p93
    %p95 = scmp.ne.s32.totalorder %s87, %s90
    %p96 = scmp.eq.s32.totalorder %s9, 0
    %p97 = por %p95, %p96
    %p98 = scmp.ne.s32.totalorder %s87, %s90
    %p99 = scmp.eq.s32.totalorder %s14, 3
    %p100 = por %p98, %p99
    %p101 = scmp.ne.s32.totalorder %s90, %s91
    %p102 = scmp.eq.s32.totalorder %s14, 0
    %p103 = por %p101, %p102
    %p104 = scmp.ne.s32.totalorder %s90, %s91
    %p105 = scmp.eq.s32.totalorder %s15, 3
    %p106 = por %p104, %p105
    %p108 = scmp.ne.s32.totalorder %s91, %s107
    %p109 = scmp.eq.s32.totalorder %s15, 0
    %p110 = por %p108, %p109
    %p111 = scmp.le.s32.totalorder 1, %s9
    %p112 = scmp.lt.s32.totalorder %s9, 5
    %p113 = pnand %p111, %p112
    %p114 = pneg %p113
    // Predicated region
    $region9: #{conv_block_forward.1} parent=5 // pred_check
      _
    $region10: #{conv_block_forward.1} parent=5 // pred_check_branch
      %116 = sbr.rel (%p113) target = $region12
    $region11: #{conv_block_forward.1} parent=5 // pred_region
      %s117 = ssub.s32 %s9, 1
      // Predicated region
      $region13: #{conv_block_forward.1} parent=11 // pred_check
        %p118 = pneg %p56
      $region14: #{conv_block_forward.1} parent=11 // pred_check_branch
        %120 = sbr.rel (%p118) target = $region16
      $region15: #{conv_block_forward.1} parent=11 // pred_region
        _
      $region16: #{conv_block_forward.1} parent=11 // pred_fallthru
        _
      // Predicated region
      $region17: #{conv_block_forward.1} parent=11 // pred_check
        %p121 = pneg %p77
      $region18: #{conv_block_forward.1} parent=11 // pred_check_branch
        %123 = sbr.rel (%p121) target = $region20
      $region19: #{conv_block_forward.1} parent=11 // pred_region
        _
      $region20: #{conv_block_forward.1} parent=11 // pred_fallthru
        _
    $region12: #{conv_block_forward.1} parent=5 // pred_fallthru
      _
    %p124 = scmp.lt.s32.totalorder %s9, 4
    // Predicated region
    $region21: #{conv_block_forward.1} parent=5 // pred_check
      %p125 = pneg %p124
    $region22: #{conv_block_forward.1} parent=5 // pred_check_branch
      %127 = sbr.rel (%p125) target = $region24
    $region23: #{conv_block_forward.1} parent=5 // pred_region
      // Predicated region
      $region25: #{conv_block_forward.1} parent=23 // pred_check
        %p128 = pneg %p29
      $region26: #{conv_block_forward.1} parent=23 // pred_check_branch
        %130 = sbr.rel (%p128) target = $region28
      $region27: #{conv_block_forward.1} parent=23 // pred_region
        %s131 = smul.u32 8, %s9
        %p132 = scmp.lt.s32.totalorder %s131, 31
        %s133 = scalar_select %p132, %s131, 31
        %s134 = smul.addr %s133, 2
        %s135 = smul.addr %s134, 4
        %s136 = scalar_lea.vmem %s0, %s135
        %s137 = smul.u32 8, %s9
      $region28: #{conv_block_forward.1} parent=23 // pred_fallthru
        _
    $region24: #{conv_block_forward.1} parent=5 // pred_fallthru
      _
    %p138 = scmp.le.s32.totalorder 1, %s9
    %p139 = scmp.lt.s32.totalorder %s9, 5
    %p140 = pnand %p138, %p139
    %p141 = pneg %p140
    // Predicated region
    $region29: #{conv_block_forward.1} parent=5 // pred_check
      _
    $region30: #{conv_block_forward.1} parent=5 // pred_check_branch
      %143 = sbr.rel (%p140) target = $region32
    $region31: #{conv_block_forward.1} parent=5 // pred_region
      %s144 = ssub.s32 %s9, 1
      %s145 = smul.u32 8, %s14
      %p146 = scmp.lt.s32.totalorder %s145, 31
      %s147 = scalar_select %p146, %s145, 31
      %s148 = smul.addr %s147, 2
      %s149 = smul.addr %s148, 4
      %s150 = scalar_lea.vmem %s0, %s149
      %p151 = pneg %p35
      %p152 = pneg %p32
      %p153 = pneg %p56
      %p154 = pneg %p53
      %p155 = pneg %p77
      %p156 = pneg %p74
      %p157 = pneg %p103
      %p158 = pneg %p100
      %s159 = smul.u32 8, %s14
      %p160 = scmp.lt.s32.totalorder %s159, 31
      %s161 = scalar_select %p160, %s159, 31
      %s162 = smul.addr %s161, 4
      %s163 = scalar_lea.vmem %s3, %s162
      %s164 = smul.u32 8, %s14
      %p165 = scmp.lt.s32.totalorder %s164, 31
      %s166 = scalar_select %p165, %s164, 31
      %s167 = smul.addr %s166, 2
      %s168 = smul.addr %s167, 4
      %s169 = scalar_lea.vmem %s0, %s168
      %s170 = smul.u32 8, %s14
      %s171 = smul.u32 8, %s14
      %p172 = scmp.lt.s32.totalorder %s171, 31
      %s173 = scalar_select %p172, %s171, 31
      %s174 = smul.addr %s173, 4
      %s175 = scalar_lea.vmem %s3, %s174
      %s176 = smul.u32 8, %s14
      %v177 = vld [vmem:[%s169] sm:$0xff]
      %v178 = vld [vmem:[%s169 + $0x8] sm:$0xff]
      %v179 = vld [vmem:[%s169 + $0x10] sm:$0xff]
      %v180 = vld [vmem:[%s169 + $0x18] sm:$0xff]
      %v181 = vld [vmem:[%s169 + $0x20] sm:$0xff]
      %v182 = vld [vmem:[%s169 + $0x28] sm:$0xff]
      %v183 = vld [vmem:[%s169 + $0x30] sm:$0xff]
      %v184 = vld [vmem:[%s169 + $0x38] sm:$0xff]
      %v185 = vld [vmem:[%s1] sm:$0xf]
      %v186 = vld [vmem:[%s1 + $0x4] sm:$0xf]
      %v187 = vld [vmem:[%s1 + $0x8] sm:$0xf]
      %v188 = vld [vmem:[%s1 + $0xc] sm:$0xf]
      %v189 = vld [vmem:[%s1 + $0x10] sm:$0xf]
      %v190 = vld [vmem:[%s1 + $0x14] sm:$0xf]
      %v191 = vld [vmem:[%s1 + $0x18] sm:$0xf]
      %v192 = vld [vmem:[%s1 + $0x1c] sm:$0xf]
      %v193 = vld [vmem:[%s1 + $0x20] sm:$0xf]
      %v194 = vld [vmem:[%s1 + $0x24] sm:$0xf]
      %v195 = vld [vmem:[%s1 + $0x28] sm:$0xf]
      %v196 = vld [vmem:[%s1 + $0x2c] sm:$0xf]
      %v197 = vld [vmem:[%s1 + $0x30] sm:$0xf]
      %v198 = vld [vmem:[%s1 + $0x34] sm:$0xf]
      %v199 = vld [vmem:[%s1 + $0x38] sm:$0xf]
      %v200 = vld [vmem:[%s1 + $0x3c] sm:$0xf]
      %v201 = vld [vmem:[%s1 + $0x40] sm:$0xf]
      %v202 = vld [vmem:[%s1 + $0x44] sm:$0xf]
      %v203 = vld [vmem:[%s1 + $0x48] sm:$0xf]
      %v204 = vld [vmem:[%s1 + $0x4c] sm:$0xf]
      %v205 = vld [vmem:[%s1 + $0x50] sm:$0xf]
      %v206 = vld [vmem:[%s1 + $0x54] sm:$0xf]
      %v207 = vld [vmem:[%s1 + $0x58] sm:$0xf]
      %v208 = vld [vmem:[%s1 + $0x5c] sm:$0xf]
      %v209 = vld [vmem:[%s1 + $0x60] sm:$0xf]
      %v210 = vld [vmem:[%s1 + $0x64] sm:$0xf]
      %v211 = vld [vmem:[%s1 + $0x68] sm:$0xf]
      %v212 = vld [vmem:[%s1 + $0x6c] sm:$0xf]
      %v213 = vld [vmem:[%s1 + $0x70] sm:$0xf]
      %v214 = vld [vmem:[%s1 + $0x74] sm:$0xf]
      %v215 = vld [vmem:[%s1 + $0x78] sm:$0xf]
      %v216 = vld [vmem:[%s1 + $0x7c] sm:$0xf]
      %v217 = vld [vmem:[%s2] sm:$0x1]
      %v219 = vperm.slane %v217, 0
      %v229 = vunpack.c.l.b16 %v177
      %v230 = vunpack.c.h.b16 %v177
      %v231 = vunpack.c.l.b16 %v178
      %v232 = vunpack.c.h.b16 %v178
      %v233 = vunpack.c.l.b16 %v179
      %v234 = vunpack.c.h.b16 %v179
      %v235 = vunpack.c.l.b16 %v180
      %v236 = vunpack.c.h.b16 %v180
      %v237 = vunpack.c.l.b16 %v181
      %v238 = vunpack.c.h.b16 %v181
      %v239 = vunpack.c.l.b16 %v182
      %v240 = vunpack.c.h.b16 %v182
      %v241 = vunpack.c.l.b16 %v183
      %v242 = vunpack.c.h.b16 %v183
      %v243 = vunpack.c.l.b16 %v184
      %v244 = vunpack.c.h.b16 %v184
      %v245 = vpack.c.b16 %v231, %v229
      %v246 = vpack.c.b16 %v232, %v230
      %v247 = vpack.c.b16 %v235, %v233
      %v248 = vpack.c.b16 %v236, %v234
      %v249 = vpack.c.b16 %v239, %v237
      %v250 = vpack.c.b16 %v240, %v238
      %v251 = vpack.c.b16 %v243, %v241
      %v252 = vpack.c.b16 %v244, %v242
      %v293 = vunpack.c.l.b16 %v185
      %v294 = vunpack.c.l.b16 %v186
      %v295 = vunpack.c.l.b16 %v187
      %v296 = vunpack.c.l.b16 %v188
      %v297 = vunpack.c.l.b16 %v189
      %v298 = vunpack.c.l.b16 %v190
      %v299 = vunpack.c.l.b16 %v191
      %v300 = vunpack.c.l.b16 %v192
      %v301 = vunpack.c.l.b16 %v193
      %v302 = vunpack.c.l.b16 %v194
      %v303 = vunpack.c.l.b16 %v195
      %v304 = vunpack.c.l.b16 %v196
      %v305 = vunpack.c.l.b16 %v197
      %v306 = vunpack.c.l.b16 %v198
      %v307 = vunpack.c.l.b16 %v199
      %v308 = vunpack.c.l.b16 %v200
      %v309 = vunpack.c.l.b16 %v201
      %v310 = vunpack.c.l.b16 %v202
      %v311 = vunpack.c.l.b16 %v203
      %v312 = vunpack.c.l.b16 %v204
      %v313 = vunpack.c.l.b16 %v205
      %v314 = vunpack.c.l.b16 %v206
      %v315 = vunpack.c.l.b16 %v207
      %v316 = vunpack.c.l.b16 %v208
      %v317 = vunpack.c.l.b16 %v209
      %v318 = vunpack.c.l.b16 %v210
      %v319 = vunpack.c.l.b16 %v211
      %v320 = vunpack.c.l.b16 %v212
      %v321 = vunpack.c.l.b16 %v213
      %v322 = vunpack.c.l.b16 %v214
      %v323 = vunpack.c.l.b16 %v215
      %v324 = vunpack.c.l.b16 %v216
      %v325 = vpack.c.b16 %v294, %v293
      %v326 = vpack.c.b16 %v296, %v295
      %v327 = vpack.c.b16 %v298, %v297
      %v328 = vpack.c.b16 %v300, %v299
      %v329 = vpack.c.b16 %v302, %v301
      %v330 = vpack.c.b16 %v304, %v303
      %v331 = vpack.c.b16 %v306, %v305
      %v332 = vpack.c.b16 %v308, %v307
      %v333 = vpack.c.b16 %v310, %v309
      %v334 = vpack.c.b16 %v312, %v311
      %v335 = vpack.c.b16 %v314, %v313
      %v336 = vpack.c.b16 %v316, %v315
      %v337 = vpack.c.b16 %v318, %v317
      %v338 = vpack.c.b16 %v320, %v319
      %v339 = vpack.c.b16 %v322, %v321
      %v340 = vpack.c.b16 %v324, %v323
      %357 = vmatpush.bf16.msra.mxu0 %v332
      %358 = vmatpush.bf16.msra.mxu0 %v331
      %359 = vmatpush.bf16.msra.mxu0 %v330
      %360 = vmatpush.bf16.msra.mxu0 %v329
      %361 = vmatpush.bf16.msra.mxu0 %v328
      %362 = vmatpush.bf16.msra.mxu0 %v327
      %363 = vmatpush.bf16.msra.mxu0 %v326
      %364 = vmatpush.bf16.msra.mxu0 %v325
      %365 = vmatmul.bf16.gmra.mxu0 %v245
      %v366 = vpop.f32.mrf.mxu0
      %v367 = vadd.f32 %v219, %v366
      %v368 = vpop.f32.mrf.mxu0
      %v369 = vadd.f32 %v219, %v368
      %370 = vmatmul.bf16.gmra.mxu0 %v247
      %v371 = vpop.f32.mrf.mxu0
      %v372 = vadd.f32 %v219, %v371
      %v373 = vpop.f32.mrf.mxu0
      %v374 = vadd.f32 %v219, %v373
      %375 = vmatmul.bf16.gmra.mxu0 %v249
      %v376 = vpop.f32.mrf.mxu0
      %v377 = vadd.f32 %v219, %v376
      %v378 = vpop.f32.mrf.mxu0
      %v379 = vadd.f32 %v219, %v378
      %380 = vmatmul.bf16.gmra.mxu0 %v251
      %v381 = vpop.f32.mrf.mxu0
      %v382 = vadd.f32 %v219, %v381
      %v383 = vpop.f32.mrf.mxu0
      %v384 = vadd.f32 %v219, %v383
      %385 = vdwg.mxu0
      %386 = vmatpush.bf16.msra.mxu0 %v340
      %387 = vmatpush.bf16.msra.mxu0 %v339
      %388 = vmatpush.bf16.msra.mxu0 %v338
      %389 = vmatpush.bf16.msra.mxu0 %v337
      %390 = vmatpush.bf16.msra.mxu0 %v336
      %391 = vmatpush.bf16.msra.mxu0 %v335
      %392 = vmatpush.bf16.msra.mxu0 %v334
      %393 = vmatpush.bf16.msra.mxu0 %v333
      %394 = vmatmul.bf16.gmra.mxu0 %v246
      %v395 = vpop.f32.mrf.mxu0
      %v396 = vadd.f32 %v367, %v395
      %v397 = vpop.f32.mrf.mxu0
      %v398 = vadd.f32 %v369, %v397
      %399 = vmatmul.bf16.gmra.mxu0 %v248
      %v400 = vpop.f32.mrf.mxu0
      %v401 = vadd.f32 %v372, %v400
      %v402 = vpop.f32.mrf.mxu0
      %v403 = vadd.f32 %v374, %v402
      %404 = vmatmul.bf16.gmra.mxu0 %v250
      %v405 = vpop.f32.mrf.mxu0
      %v406 = vadd.f32 %v377, %v405
      %v407 = vpop.f32.mrf.mxu0
      %v408 = vadd.f32 %v379, %v407
      %409 = vmatmul.bf16.gmra.mxu0 %v252
      %v410 = vpop.f32.mrf.mxu0
      %v411 = vadd.f32 %v382, %v410
      %v412 = vpop.f32.mrf.mxu0
      %v413 = vadd.f32 %v384, %v412
      %414 = vdwg.mxu0
      %v415 = vmax.f32 %v396, 0.0
      %v416 = vmax.f32 %v398, 0.0
      %v417 = vmax.f32 %v401, 0.0
      %v418 = vmax.f32 %v403, 0.0
      %v419 = vmax.f32 %v406, 0.0
      %v420 = vmax.f32 %v408, 0.0
      %v421 = vmax.f32 %v411, 0.0
      %v422 = vmax.f32 %v413, 0.0
      %v423 = vpack.c.bf16 %v415, %v415
      %v424 = vpack.c.bf16 %v416, %v416
      %v425 = vpack.c.bf16 %v417, %v417
      %v426 = vpack.c.bf16 %v418, %v418
      %v427 = vpack.c.bf16 %v419, %v419
      %v428 = vpack.c.bf16 %v420, %v420
      %v429 = vpack.c.bf16 %v421, %v421
      %v430 = vpack.c.bf16 %v422, %v422
      %431 = vst [vmem:[%s175] sm:$0xf] %v423
      %432 = vst [vmem:[%s175 + $0x4] sm:$0xf] %v424
      %433 = vst [vmem:[%s175 + $0x8] sm:$0xf] %v425
      %434 = vst [vmem:[%s175 + $0xc] sm:$0xf] %v426
      %435 = vst [vmem:[%s175 + $0x10] sm:$0xf] %v427
      %436 = vst [vmem:[%s175 + $0x14] sm:$0xf] %v428
      %437 = vst [vmem:[%s175 + $0x18] sm:$0xf] %v429
      %438 = vst [vmem:[%s175 + $0x1c] sm:$0xf] %v430
      %s439 = smul.u32 8, %s14
      %p440 = scmp.lt.s32.totalorder %s439, 31
      %s441 = scalar_select %p440, %s439, 31
      %s442 = smul.addr %s441, 4
      %s443 = scalar_lea.vmem %s3, %s442
      // Predicated region
      $region33: #{conv_block_forward.1} parent=31 // pred_check
        %p444 = pneg %p100
      $region34: #{conv_block_forward.1} parent=31 // pred_check_branch
        %446 = sbr.rel (%p444) target = $region36
      $region35: #{conv_block_forward.1} parent=31 // pred_region
        %s447 = smul.u32 8, %s14
      $region36: #{conv_block_forward.1} parent=31 // pred_fallthru
        _
    $region32: #{conv_block_forward.1} parent=5 // pred_fallthru
      _
    %p448 = scmp.le.s32.totalorder 2, %s9
    // Predicated region
    $region37: #{conv_block_forward.1} parent=5 // pred_check
      %p449 = pneg %p448
    $region38: #{conv_block_forward.1} parent=5 // pred_check_branch
      %451 = sbr.rel (%p449) target = $region40
    $region39: #{conv_block_forward.1} parent=5 // pred_region
      %s452 = ssub.s32 %s9, 2
      // Predicated region
      $region41: #{conv_block_forward.1} parent=39 // pred_check
        %p453 = pneg %p106
      $region42: #{conv_block_forward.1} parent=39 // pred_check_branch
        %455 = sbr.rel (%p453) target = $region44
      $region43: #{conv_block_forward.1} parent=39 // pred_region
        %s456 = smul.u32 8, %s15
        %p457 = scmp.lt.s32.totalorder %s456, 31
        %s458 = scalar_select %p457, %s456, 31
        %s459 = smul.addr %s458, 4
        %s460 = scalar_lea.vmem %s3, %s459
      $region44: #{conv_block_forward.1} parent=39 // pred_fallthru
        _
    $region40: #{conv_block_forward.1} parent=5 // pred_fallthru
      _
  $region6: #{conv_block_forward.1} parent=0 // loop_footer
    %s13 = sadd.s32 1, %s9
  $region7: #{conv_block_forward.1} parent=0 // loop_footer_branch
    %8 = sbr.rel target = $region3
  $region8: #{conv_block_forward.1} parent=0 // loop_exit
    _

</llo_original>
